<compile_context>
chip_gen: v5e
topology: v5e:2x2
jax: 0.10.0
libtpu: 0.0.40
codegen_flags: <defaults>
</compile_context>

<pallas_src>
import functools

import jax
import jax.numpy as jnp
from jax import lax
from jax.experimental import pallas as pl
from jax.experimental.pallas import tpu as pltpu


# ---------------------------------------------------------------------------
# Single-pass kernel: whole (C, H*W) plane(s) of a batch tile live in VMEM.
# ---------------------------------------------------------------------------
def _channel_attention_kernel(x_ref, w1t_ref, b1_ref, w2t_ref, b2_ref, o_ref, *, bt):
    x = x_ref[...]                                            # (Bt, C, HW), native dtype
    inv_hw = 1.0 / float(x.shape[-1])

    # AdaptiveAvgPool2d(1) / AdaptiveMaxPool2d(1): last-axis (lane) reductions.
    # Sum accumulates in f32; no full f32 copy of the tile is materialized for bf16.
    avg = jnp.sum(x, axis=-1, dtype=jnp.float32) * inv_hw     # (Bt, C)
    mx = jnp.max(x, axis=-1).astype(jnp.float32)              # (Bt, C)
    pooled = jnp.concatenate([avg, mx], axis=0)               # (2*Bt, C), C on lanes

    # Shared 1x1-conv MLP: fc1 -> ReLU -> fc2, batched over {avg, max} rows.
    h = jnp.dot(pooled, w1t_ref[...], preferred_element_type=jnp.float32) + b1_ref[...]
    h = jnp.maximum(h, 0.0)
    o = jnp.dot(h, w2t_ref[...], preferred_element_type=jnp.float32) + b2_ref[...]

    att = jax.nn.sigmoid(o[:bt] + o[bt:])                     # (Bt, C) f32
    # Scale in the native dtype (bf16 stays bf16 end-to-end).
    o_ref[...] = (x * att.astype(x.dtype)[:, :, None]).astype(o_ref.dtype)


# ---------------------------------------------------------------------------
# Two-pass fallback for very large feature maps.
#   pass 1: HW-tiled pooling (+ MLP + sigmoid) -> (B, C, 1) attention
#   pass 2: HW-tiled elementwise scale (lane-dense).
# ---------------------------------------------------------------------------
def _pool_mlp_kernel(x_ref, w1t_ref, b1_ref, w2t_ref, b2_ref, att_ref,
                     sum_acc, max_acc, *, bt, hw_total, hw_tile):
    j = pl.program_id(1)

    @pl.when(j == 0)
    def _():
        sum_acc[...] = jnp.zeros_like(sum_acc)
        max_acc[...] = jnp.full_like(max_acc, -jnp.inf)

    x = x_ref[...]                                            # (bt, C, hw_tile)
    lane = lax.broadcasted_iota(jnp.int32, x.shape, dimension=2)
    valid = (j * hw_tile + lane) < hw_total                   # mask partial last HW tile
    xs = jnp.where(valid, x, jnp.zeros_like(x))
    xm = jnp.where(valid, x, jnp.array(-jnp.inf, dtype=x.dtype))
    sum_acc[...] += jnp.sum(xs, axis=-1, dtype=jnp.float32)
    max_acc[...] = jnp.maximum(max_acc[...], jnp.max(xm, axis=-1).astype(jnp.float32))

    @pl.when(j == pl.num_programs(1) - 1)
    def _():
        avg = sum_acc[...] * (1.0 / float(hw_total))          # (bt, C)
        pooled = jnp.concatenate([avg, max_acc[...]], axis=0)  # (2*bt, C)
        h = jnp.dot(pooled, w1t_ref[...],
                    preferred_element_type=jnp.float32) + b1_ref[...]
        h = jnp.maximum(h, 0.0)
        o = jnp.dot(h, w2t_ref[...],
                    preferred_element_type=jnp.float32) + b2_ref[...]
        att = jax.nn.sigmoid(o[:bt] + o[bt:])                 # (bt, C)
        att_ref[...] = att[:, :, None].astype(att_ref.dtype)  # (bt, C, 1)


def _apply_kernel(att_ref, x_ref, o_ref):
    x = x_ref[...]                                            # (bt, C, hw_tile)
    att = att_ref[...].astype(x.dtype)                        # (bt, C, 1)
    o_ref[...] = (x * att).astype(o_ref.dtype)


# ---------------------------------------------------------------------------
# Wrapper
# ---------------------------------------------------------------------------
def _chip_flags():
    kind = ""
    try:
        kind = jax.devices()[0].device_kind.lower()
    except Exception:
        pass
    return ("v7" in kind), ("v6" in kind)


def channel_attention(x, w1, b1, w2, b2, *, target_tile_bytes=None, force_two_pass=False):
    """x: (B, C, H, W); w1: (Cr, C); b1: (Cr,); w2: (C, Cr); b2: (C,)."""
    B, C, H, W = x.shape
    Cr = w1.shape[0]
    HW = H * W
    itemsize = jnp.dtype(x.dtype).itemsize

    is_v7x, is_v6 = _chip_flags()
    if target_tile_bytes is None:
        # HBM-bound: large tiles amortize the ~0.35us fixed cost per grid step.
        target_tile_bytes = (8 << 20) if is_v6 else (4 << 20)
    # Real VMEM footprint ~4x the tile (input + output, each double-buffered); raise the
    # scoped-VMEM limit explicitly (v5e default is only 16 MiB).
    vmem_limit = (48 << 20) if is_v7x else (64 << 20)

    # Lane-dense layout for the heavy tensors; pre-transpose the tiny MLP weights so C
    # stays on the lane axis through the whole kernel.
    x2 = x.reshape(B, C, HW)
    w1t = w1.reshape(Cr, C).T                                 # (C, Cr)
    w2t = w2.reshape(C, Cr).T                                 # (Cr, C)
    b1r = b1.reshape(1, Cr).astype(jnp.float32)
    b2r = b2.reshape(1, C).astype(jnp.float32)

    per_batch_bytes = C * HW * itemsize
    two_pass_threshold = (24 << 20) if is_v7x else (64 << 20)
    two_pass = force_two_pass or (4 * per_batch_bytes > two_pass_threshold)

    if not two_pass:
        bt = max(1, min(B, target_tile_bytes // max(per_batch_bytes, 1)))
        # Prefer >= 4 grid steps (hide pipeline prologue/epilogue) while tiles stay
        # >= ~1 MiB; otherwise only shrink on v7x to keep both TensorCores fed.
        bt4 = max(1, pl.cdiv(B, 4))
        if bt4 * per_batch_bytes >= (1 << 20):
            bt = min(bt, bt4)
        elif is_v7x and B >= 2:
            bt = min(bt, max(1, B // 2))
        grid = (pl.cdiv(B, bt),)  # partial last batch block is safe: rows independent

        kernel = functools.partial(_channel_attention_kernel, bt=bt)
        out = pl.pallas_call(
            kernel,
            out_shape=jax.ShapeDtypeStruct((B, C, HW), x.dtype),
            grid_spec=pltpu.PrefetchScalarGridSpec(
                num_scalar_prefetch=0,
                grid=grid,
                in_specs=[
                    pl.BlockSpec((bt, C, HW), lambda i: (i, 0, 0)),   # x (lane-dense)
                    pl.BlockSpec((C, Cr), lambda i: (0, 0)),          # fc1 weight^T
                    pl.BlockSpec((1, Cr), lambda i: (0, 0)),          # fc1 bias row
                    pl.BlockSpec((Cr, C), lambda i: (0, 0)),          # fc2 weight^T
                    pl.BlockSpec((1, C), lambda i: (0, 0)),           # fc2 bias row
                ],
                out_specs=pl.BlockSpec((bt, C, HW), lambda i: (i, 0, 0)),
            ),
            compiler_params=pltpu.CompilerParams(
                dimension_semantics=("parallel",),
                vmem_limit_bytes=vmem_limit,
            ),
        )(x2, w1t, b1r, w2t, b2r)
        return out.reshape(B, C, H, W)

    # ---- Two-pass path: HW-tiled pool + apply --------------------------------------
    hw_budget = max(1, target_tile_bytes // max(C * itemsize, 1))
    if HW <= 128 or hw_budget >= HW:
        hw_tile = HW
    else:
        hw_tile = max(128, (min(hw_budget, HW) // 128) * 128)  # multiple of 128 lanes
    bt = max(1, min(B, target_tile_bytes // max(C * hw_tile * itemsize, 1)))
    grid = (pl.cdiv(B, bt), pl.cdiv(HW, hw_tile))

    pool_kernel = functools.partial(_pool_mlp_kernel, bt=bt, hw_total=HW, hw_tile=hw_tile)
    att = pl.pallas_call(
        pool_kernel,
        out_shape=jax.ShapeDtypeStruct((B, C, 1), jnp.float32),
        grid_spec=pltpu.PrefetchScalarGridSpec(
            num_scalar_prefetch=0,
            grid=grid,
            in_specs=[
                pl.BlockSpec((bt, C, hw_tile), lambda i, j: (i, 0, j)),
                pl.BlockSpec((C, Cr), lambda i, j: (0, 0)),
                pl.BlockSpec((1, Cr), lambda i, j: (0, 0)),
                pl.BlockSpec((Cr, C), lambda i, j: (0, 0)),
                pl.BlockSpec((1, C), lambda i, j: (0, 0)),
            ],
            out_specs=pl.BlockSpec((bt, C, 1), lambda i, j: (i, 0, 0)),
            scratch_shapes=[pltpu.VMEM((bt, C), jnp.float32),
                            pltpu.VMEM((bt, C), jnp.float32)],
        ),
        compiler_params=pltpu.CompilerParams(
            dimension_semantics=("parallel", "arbitrary"),
            vmem_limit_bytes=vmem_limit,
        ),
    )(x2, w1t, b1r, w2t, b2r)

    out = pl.pallas_call(
        _apply_kernel,
        out_shape=jax.ShapeDtypeStruct((B, C, HW), x.dtype),
        grid_spec=pltpu.PrefetchScalarGridSpec(
            num_scalar_prefetch=0,
            grid=grid,
            in_specs=[
                pl.BlockSpec((bt, C, 1), lambda i, j: (i, 0, 0)),
                pl.BlockSpec((bt, C, hw_tile), lambda i, j: (i, 0, j)),
            ],
            out_specs=pl.BlockSpec((bt, C, hw_tile), lambda i, j: (i, 0, j)),
        ),
        compiler_params=pltpu.CompilerParams(
            dimension_semantics=("parallel", "parallel"),
            vmem_limit_bytes=vmem_limit,
        ),
    )(att, x2)
    return out.reshape(B, C, H, W)


def channel_attention_ref(x, w1, b1, w2, b2):
    """Pure-JAX reference matching the PyTorch ChannelAttention forward."""
    avg = jnp.mean(x, axis=(2, 3))                            # (B, C)
    mx = jnp.max(x, axis=(2, 3))                              # (B, C)

    def mlp(v):                                               # shared fc1 -> ReLU -> fc2
        h = jnp.maximum(v @ w1.T + b1, 0.0)
        return h @ w2.T + b2

    att = jax.nn.sigmoid(mlp(avg) + mlp(mx))[:, :, None, None]
    return x * att


if __name__ == "__main__":
    reduction_ratio = 16

    def make_inputs(key, B, C, H, W):
        Cr = max(1, C // reduction_ratio)
        kx, k1, k2, k3, k4 = jax.random.split(key, 5)
        x = jax.random.normal(kx, (B, C, H, W), jnp.float32)
        w1 = jax.random.normal(k1, (Cr, C), jnp.float32) * 0.1   # fc1: Conv2d(C, C//r, 1)
        b1 = jax.random.normal(k2, (Cr,), jnp.float32) * 0.1
        w2 = jax.random.normal(k3, (C, Cr), jnp.float32) * 0.1   # fc2: Conv2d(C//r, C, 1)
        b2 = jax.random.normal(k4, (C,), jnp.float32) * 0.1
        return x, w1, b1, w2, b2

    key = jax.random.PRNGKey(0)
    k0, k1, k2 = jax.random.split(key, 3)

    # 1) Main path: single-pass, full-plane blocks, default chip-aware tiling.
    x, w1, b1, w2, b2 = make_inputs(k0, 2, 32, 16, 16)
    out = jax.block_until_ready(channel_attention(x, w1, b1, w2, b2))
    ref = channel_attention_ref(x, w1, b1, w2, b2)
    assert out.shape == x.shape
    err = float(jnp.max(jnp.abs(out - ref)))
    assert jnp.allclose(out, ref, atol=1e-4, rtol=1e-4), f"single-pass max_err={err}"

    # 2) Single-pass with a cdiv grid / partial last batch block (awkward B).
    x, w1, b1, w2, b2 = make_inputs(k1, 3, 32, 16, 16)
    out = jax.block_until_ready(
        channel_attention(x, w1, b1, w2, b2, target_tile_bytes=64 * 1024))
    ref = channel_attention_ref(x, w1, b1, w2, b2)
    err = float(jnp.max(jnp.abs(out - ref)))
    assert jnp.allclose(out, ref, atol=1e-4, rtol=1e-4), f"partial-batch max_err={err}"

    # 3) Two-pass fallback (HW-tiled pool + apply), including a masked partial HW tile.
    x, w1, b1, w2, b2 = make_inputs(k2, 3, 32, 15, 15)
    out = jax.block_until_ready(
        channel_attention(x, w1, b1, w2, b2, target_tile_bytes=16 * 1024,
                          force_two_pass=True))
    ref = channel_attention_ref(x, w1, b1, w2, b2)
    err = float(jnp.max(jnp.abs(out - ref)))
    assert jnp.allclose(out, ref, atol=1e-4, rtol=1e-4), f"two-pass max_err={err}"

    print("KERNEL_OK")
</pallas_src>

<mosaic_0001>
module attributes {stable_mosaic.version = 11 : i64} {
  func.func @_channel_attention_kernel(%arg0: i32, %arg1: memref<2x32x256xf32, #tpu.memory_space<vmem>>, %arg2: memref<32x2xf32, #tpu.memory_space<vmem>>, %arg3: memref<1x2xf32, #tpu.memory_space<vmem>>, %arg4: memref<2x32xf32, #tpu.memory_space<vmem>>, %arg5: memref<1x32xf32, #tpu.memory_space<vmem>>, %arg6: memref<2x32x256xf32, #tpu.memory_space<vmem>>) attributes {dimension_semantics = [#tpu.dimension_semantics<parallel>], iteration_bounds = array<i64: 1>, scalar_prefetch = 0 : i64, scratch_operands = 0 : i64, tpu.core_type = #tpu.core_type<tc>, window_params = [{transform_indices = @transform_0, window_bounds = array<i64: 2, 32, 256>}, {pipeline_mode = #tpu.pipeline_mode<synchronous>, transform_indices = @transform_1, window_bounds = array<i64: 32, 2>}, {pipeline_mode = #tpu.pipeline_mode<synchronous>, transform_indices = @transform_2, window_bounds = array<i64: 1, 2>}, {pipeline_mode = #tpu.pipeline_mode<synchronous>, transform_indices = @transform_3, window_bounds = array<i64: 2, 32>}, {pipeline_mode = #tpu.pipeline_mode<synchronous>, transform_indices = @transform_4, window_bounds = array<i64: 1, 32>}, {transform_indices = @transform_5, window_bounds = array<i64: 2, 32, 256>}]} {
    %c0 = arith.constant 0 : index
    %c0_0 = arith.constant 0 : index
    %c0_1 = arith.constant 0 : index
    %0 = vector.load %arg1[%c0, %c0_0, %c0_1] : memref<2x32x256xf32, #tpu.memory_space<vmem>>, vector<2x32x256xf32>
    %cst = arith.constant dense<0.000000e+00> : vector<2x32xf32>
    %1 = vector.multi_reduction <add>, %0, %cst [2] : vector<2x32x256xf32> to vector<2x32xf32>
    %cst_2 = arith.constant 3.906250e-03 : f32
    %2 = vector.broadcast %cst_2 : f32 to vector<2x32xf32>
    %3 = arith.mulf %1, %2 : vector<2x32xf32>
    %cst_3 = arith.constant dense<0xFF800000> : vector<2x32xf32>
    %4 = vector.multi_reduction <maximumf>, %0, %cst_3 [2] : vector<2x32x256xf32> to vector<2x32xf32>
    %5 = tpu.concatenate %3, %4 in 0 : vector<2x32xf32>, vector<2x32xf32> -> vector<4x32xf32>
    %c0_4 = arith.constant 0 : index
    %c0_5 = arith.constant 0 : index
    %6 = vector.load %arg2[%c0_4, %c0_5] : memref<32x2xf32, #tpu.memory_space<vmem>>, vector<32x2xf32>
    %cst_6 = arith.constant dense<0.000000e+00> : vector<4x2xf32>
    %7 = tpu.matmul %5, %6, %cst_6 {dimension_numbers = #tpu.dot_dimension_numbers<[1], [0], [0], [1], [0, 0, 1, 1], [], []>} : vector<4x32xf32>, vector<32x2xf32>, vector<4x2xf32> -> vector<4x2xf32>
    %c0_7 = arith.constant 0 : index
    %c0_8 = arith.constant 0 : index
    %8 = vector.load %arg3[%c0_7, %c0_8] : memref<1x2xf32, #tpu.memory_space<vmem>>, vector<1x2xf32>
    %9 = vector.broadcast %8 : vector<1x2xf32> to vector<4x2xf32>
    %10 = arith.addf %7, %9 : vector<4x2xf32>
    %cst_9 = arith.constant 0.000000e+00 : f32
    %11 = vector.broadcast %cst_9 : f32 to vector<4x2xf32>
    %12 = arith.maximumf %10, %11 : vector<4x2xf32>
    %c0_10 = arith.constant 0 : index
    %c0_11 = arith.constant 0 : index
    %13 = vector.load %arg4[%c0_10, %c0_11] : memref<2x32xf32, #tpu.memory_space<vmem>>, vector<2x32xf32>
    %cst_12 = arith.constant dense<0.000000e+00> : vector<4x32xf32>
    %14 = tpu.matmul %12, %13, %cst_12 {dimension_numbers = #tpu.dot_dimension_numbers<[1], [0], [0], [1], [0, 0, 1, 1], [], []>} : vector<4x2xf32>, vector<2x32xf32>, vector<4x32xf32> -> vector<4x32xf32>
    %c0_13 = arith.constant 0 : index
    %c0_14 = arith.constant 0 : index
    %15 = vector.load %arg5[%c0_13, %c0_14] : memref<1x32xf32, #tpu.memory_space<vmem>>, vector<1x32xf32>
    %16 = vector.broadcast %15 : vector<1x32xf32> to vector<4x32xf32>
    %17 = arith.addf %14, %16 : vector<4x32xf32>
    %18 = vector.extract_strided_slice %17 {offsets = [0, 0], sizes = [2, 32], strides = [1, 1]} : vector<4x32xf32> to vector<2x32xf32>
    %19 = vector.extract_strided_slice %17 {offsets = [2, 0], sizes = [2, 32], strides = [1, 1]} : vector<4x32xf32> to vector<2x32xf32>
    %20 = arith.addf %18, %19 : vector<2x32xf32>
    %21 = arith.negf %20 : vector<2x32xf32>
    %22 = math.exp %21 : vector<2x32xf32>
    %cst_15 = arith.constant 1.000000e+00 : f32
    %23 = vector.broadcast %cst_15 : f32 to vector<2x32xf32>
    %24 = arith.addf %23, %22 : vector<2x32xf32>
    %25 = arith.divf %23, %24 : vector<2x32xf32>
    %26 = vector.shape_cast %25 : vector<2x32xf32> to vector<2x32x1xf32>
    %27 = vector.broadcast %26 : vector<2x32x1xf32> to vector<2x32x256xf32>
    %28 = arith.mulf %0, %27 : vector<2x32x256xf32>
    %c0_16 = arith.constant 0 : index
    %c0_17 = arith.constant 0 : index
    %c0_18 = arith.constant 0 : index
    %29 = vector.load %arg6[%c0_16, %c0_17, %c0_18] : memref<2x32x256xf32, #tpu.memory_space<vmem>>, vector<2x32x256xf32>
    tpu.vector_store %arg6[%c0_16, %c0_17, %c0_18], %28 {strides = array<i32>} : memref<2x32x256xf32, #tpu.memory_space<vmem>>, vector<2x32x256xf32>,
    return
  }
  func.func @transform_0(%arg0: i32) -> (i32, i32, i32) {
    %c0_i32 = arith.constant 0 : i32
    %c0_i32_0 = arith.constant 0 : i32
    %c0_i32_1 = arith.constant 0 : i32
    return %arg0, %c0_i32, %c0_i32_0 : i32, i32, i32
  }
  func.func @transform_1(%arg0: i32) -> (i32, i32) {
    %c0_i32 = arith.constant 0 : i32
    %c0_i32_0 = arith.constant 0 : i32
    %c0_i32_1 = arith.constant 0 : i32
    return %c0_i32, %c0_i32_0 : i32, i32
  }
  func.func @transform_2(%arg0: i32) -> (i32, i32) {
    %c0_i32 = arith.constant 0 : i32
    %c0_i32_0 = arith.constant 0 : i32
    %c0_i32_1 = arith.constant 0 : i32
    return %c0_i32, %c0_i32_0 : i32, i32
  }
  func.func @transform_3(%arg0: i32) -> (i32, i32) {
    %c0_i32 = arith.constant 0 : i32
    %c0_i32_0 = arith.constant 0 : i32
    %c0_i32_1 = arith.constant 0 : i32
    return %c0_i32, %c0_i32_0 : i32, i32
  }
  func.func @transform_4(%arg0: i32) -> (i32, i32) {
    %c0_i32 = arith.constant 0 : i32
    %c0_i32_0 = arith.constant 0 : i32
    %c0_i32_1 = arith.constant 0 : i32
    return %c0_i32, %c0_i32_0 : i32, i32
  }
  func.func @transform_5(%arg0: i32) -> (i32, i32, i32) {
    %c0_i32 = arith.constant 0 : i32
    %c0_i32_0 = arith.constant 0 : i32
    %c0_i32_1 = arith.constant 0 : i32
    return %arg0, %c0_i32, %c0_i32_0 : i32, i32, i32
  }
}

</mosaic_0001>

<llo_original>
// kernel: tpu_custom_call.1
$region0: #{tpu_custom_call.1}
  #allocation0 [shape = 'u32[]', space=smem, size = 0x4, offset = 0x4, fixed_abs, tag = 'smem constant byte address 0x4 - core index']
  #allocation1 [shape = 'u32[72,128]{1,0:T(1,128)}', space=vmem, size = 0x9000, scoped, tag = 'internal scratch']
  %s0 = inlined_call_operand.hbm [shape: f32[2,32,256], index: 0, kind: input, shape index: {}]
  %s1 = inlined_call_operand.vmem [shape: f32[32,2], index: 1, kind: input, shape index: {}]
  %s2 = inlined_call_operand.vmem [shape: f32[1,2], index: 2, kind: input, shape index: {}]
  %s3 = inlined_call_operand.vmem [shape: f32[2,32], index: 3, kind: input, shape index: {}]
  %s4 = inlined_call_operand.vmem [shape: f32[1,32], index: 4, kind: input, shape index: {}]
  %s5 = inlined_call_operand.hbm [shape: f32[2,32,256], index: 5, kind: output, shape index: {}]
  %s6 = sld [smem:[#allocation0]]
  $region34: #{tpu_custom_call.1} parent=0
    _
  %s8 = ssub.s32 1, %s6
  %s9 = scalar_select 0, %s8, %s6
  $region1: #{tpu_custom_call.1} parent=0
    #allocation2 [shape = 'u8[65536]{0}', space=vmem, size = 0x10000, scoped, tag = 'input window, operand 0, single buffered']
    #allocation3 [shape = 's32[1]{0}', space=sflag, size = 0x4, scoped, tag = 'scoped memory for tpu_custom_call.1']
    #allocation4 [shape = 's32[1]{0}', space=sflag, size = 0x4, scoped, tag = 'scoped memory for tpu_custom_call.1']
    #allocation5 [shape = 'u8[65536]{0}', space=vmem, size = 0x10000, scoped, tag = 'output window, operand 0, single buffered']
    %10 = vsyncpa [#allocation3], 0
    %11 = vsyncpa [#allocation4], 0
    // Predicated region
    $region2: #{tpu_custom_call.1} parent=1 // pred_check
      _
    $region3: #{tpu_custom_call.1} parent=1 // pred_check_branch
      %13 = sbr.rel (0) target = $region5
    $region4: #{tpu_custom_call.1} parent=1 // pred_region
      %15 = vsyncadd [#allocation3], 0
      %s16 = sshll.u32 %s0, 4
      %s17 = int_to_ptr.hbm [resolvable:$true] %s16
      %s18 = sshll.u32 [#allocation2], 4
      %s19 = int_to_ptr.vmem [resolvable:$true] %s18
      %24 = dma.hbm_to_vmem [thread:$0]  %s17, 2048, %s19, [#allocation3], 256, 256, 16
    $region5: #{tpu_custom_call.1} parent=1 // pred_fallthru
      _
    // Predicated region
    $region6: #{tpu_custom_call.1} parent=1 // pred_check
      _
    $region7: #{tpu_custom_call.1} parent=1 // pred_check_branch
      %26 = sbr.rel (0) target = $region9
    $region8: #{tpu_custom_call.1} parent=1 // pred_region
      _
    $region9: #{tpu_custom_call.1} parent=1 // pred_fallthru
      _
    // Predicated region
    $region10: #{tpu_custom_call.1} parent=1 // pred_check
      _
    $region11: #{tpu_custom_call.1} parent=1 // pred_check_branch
      %28 = sbr.rel (0) target = $region13
    $region12: #{tpu_custom_call.1} parent=1 // pred_region
      _
    $region13: #{tpu_custom_call.1} parent=1 // pred_fallthru
      _
    // Predicated region
    $region14: #{tpu_custom_call.1} parent=1 // pred_check
      _
    $region15: #{tpu_custom_call.1} parent=1 // pred_check_branch
      %30 = sbr.rel (0) target = $region17
    $region16: #{tpu_custom_call.1} parent=1 // pred_region
      _
    $region17: #{tpu_custom_call.1} parent=1 // pred_fallthru
      _
    // Predicated region
    $region18: #{tpu_custom_call.1} parent=1 // pred_check
      _
    $region19: #{tpu_custom_call.1} parent=1 // pred_check_branch
      %32 = sbr.rel (0) target = $region21
    $region20: #{tpu_custom_call.1} parent=1 // pred_region
      _
    $region21: #{tpu_custom_call.1} parent=1 // pred_fallthru
      _
    // Predicated region
    $region22: #{tpu_custom_call.1} parent=1 // pred_check
      _
    $region23: #{tpu_custom_call.1} parent=1 // pred_check_branch
      %34 = sbr.rel (0) target = $region25
    $region24: #{tpu_custom_call.1} parent=1 // pred_region
      %36 = dma.done [#allocation3], 2048
    $region25: #{tpu_custom_call.1} parent=1 // pred_fallthru
      _
    %v37 = vld [vmem:[#allocation2] sm:$0xff]
    %v38 = vld [vmem:[#allocation2 + $0x8] sm:$0xff]
    %v39 = vld [vmem:[#allocation2 + $0x10] sm:$0xff]
    %v40 = vld [vmem:[#allocation2 + $0x18] sm:$0xff]
    %v41 = vld [vmem:[#allocation2 + $0x20] sm:$0xff]
    %v42 = vld [vmem:[#allocation2 + $0x28] sm:$0xff]
    %v43 = vld [vmem:[#allocation2 + $0x30] sm:$0xff]
    %v44 = vld [vmem:[#allocation2 + $0x38] sm:$0xff]
    %v45 = vld [vmem:[#allocation2 + $0x40] sm:$0xff]
    %v46 = vld [vmem:[#allocation2 + $0x48] sm:$0xff]
    %v47 = vld [vmem:[#allocation2 + $0x50] sm:$0xff]
    %v48 = vld [vmem:[#allocation2 + $0x58] sm:$0xff]
    %v49 = vld [vmem:[#allocation2 + $0x60] sm:$0xff]
    %v50 = vld [vmem:[#allocation2 + $0x68] sm:$0xff]
    %v51 = vld [vmem:[#allocation2 + $0x70] sm:$0xff]
    %v52 = vld [vmem:[#allocation2 + $0x78] sm:$0xff]
    %v53 = vadd.f32 %v37, %v38
    %54 = vadd.xlane.f32.xlu0 %v53
    %v55 = vpop.xlane.xlu0 %54
    %v56 = vadd.f32 %v39, %v40
    %57 = vadd.xlane.f32.xlu0 %v56
    %v58 = vpop.xlane.xlu0 %57
    %v59 = vadd.f32 %v41, %v42
    %60 = vadd.xlane.f32.xlu0 %v59
    %v61 = vpop.xlane.xlu0 %60
    %v62 = vadd.f32 %v43, %v44
    %63 = vadd.xlane.f32.xlu0 %v62
    %v64 = vpop.xlane.xlu0 %63
    %v65 = vadd.f32 %v45, %v46
    %66 = vadd.xlane.f32.xlu0 %v65
    %v67 = vpop.xlane.xlu0 %66
    %v68 = vadd.f32 %v47, %v48
    %69 = vadd.xlane.f32.xlu0 %v68
    %v70 = vpop.xlane.xlu0 %69
    %v71 = vadd.f32 %v49, %v50
    %72 = vadd.xlane.f32.xlu0 %v71
    %v73 = vpop.xlane.xlu0 %72
    %v74 = vadd.f32 %v51, %v52
    %75 = vadd.xlane.f32.xlu0 %v74
    %v76 = vpop.xlane.xlu0 %75
    %v77 = vmul.f32 %v55, 0.00390625
    %v78 = vmul.f32 %v58, 0.00390625
    %v79 = vmul.f32 %v61, 0.00390625
    %v80 = vmul.f32 %v64, 0.00390625
    %v81 = vmul.f32 %v67, 0.00390625
    %v82 = vmul.f32 %v70, 0.00390625
    %v83 = vmul.f32 %v73, 0.00390625
    %v84 = vmul.f32 %v76, 0.00390625
    %v85 = vmax.f32 %v37, %v38
    %86 = vmax.xlane.f32.xlu0 %v85
    %v87 = vpop.xlane.xlu0 %86
    %v88 = vmax.f32 %v39, %v40
    %89 = vmax.xlane.f32.xlu0 %v88
    %v90 = vpop.xlane.xlu0 %89
    %v91 = vmax.f32 %v41, %v42
    %92 = vmax.xlane.f32.xlu0 %v91
    %v93 = vpop.xlane.xlu0 %92
    %v94 = vmax.f32 %v43, %v44
    %95 = vmax.xlane.f32.xlu0 %v94
    %v96 = vpop.xlane.xlu0 %95
    %v97 = vmax.f32 %v45, %v46
    %98 = vmax.xlane.f32.xlu0 %v97
    %v99 = vpop.xlane.xlu0 %98
    %v100 = vmax.f32 %v47, %v48
    %101 = vmax.xlane.f32.xlu0 %v100
    %v102 = vpop.xlane.xlu0 %101
    %v103 = vmax.f32 %v49, %v50
    %104 = vmax.xlane.f32.xlu0 %v103
    %v105 = vpop.xlane.xlu0 %104
    %v106 = vmax.f32 %v51, %v52
    %107 = vmax.xlane.f32.xlu0 %v106
    %v108 = vpop.xlane.xlu0 %107
    %v117 = vlaneseq
    %v118 = vand.u32 %v117, 127
    %v119 = vperm.slane %v77, %v118
    %v120 = vadd.s32 %v118, 4294967288
    %v121 = vperm.slane %v78, %v120
    %vm122 = vcmask 130112
    %v123 = vsel %vm122, %v121, %v119
    %v124 = vadd.s32 %v118, 4294967280
    %v125 = vperm.slane %v79, %v124
    %vm126 = vcmask 195712
    %v127 = vsel %vm126, %v125, %v123
    %v128 = vadd.s32 %v118, 4294967272
    %v129 = vperm.slane %v80, %v128
    %vm130 = vcmask 261312
    %v131 = vsel %vm130, %v129, %v127
    %v132 = vperm.slane %v81, %v118
    %v133 = vperm.slane %v82, %v120
    %v134 = vsel %vm122, %v133, %v132
    %v135 = vperm.slane %v83, %v124
    %v136 = vsel %vm126, %v135, %v134
    %v137 = vperm.slane %v84, %v128
    %v138 = vsel %vm130, %v137, %v136
    %vm139 = vcmask 1041409
    %v140 = vsel %vm139, %v138, %v131
    %v150 = vperm.slane %v87, %v118
    %v151 = vperm.slane %v90, %v120
    %v152 = vsel %vm122, %v151, %v150
    %v153 = vperm.slane %v93, %v124
    %v154 = vsel %vm126, %v153, %v152
    %v155 = vperm.slane %v96, %v128
    %v156 = vsel %vm130, %v155, %v154
    %v157 = vperm.slane %v99, %v118
    %v158 = vperm.slane %v102, %v120
    %v159 = vsel %vm122, %v158, %v157
    %v160 = vperm.slane %v105, %v124
    %v161 = vsel %vm126, %v160, %v159
    %v162 = vperm.slane %v108, %v128
    %v163 = vsel %vm130, %v162, %v161
    %vm164 = vcmask 1043459
    %v165 = vsel %vm164, %v163, %v156
    %vm167 = vcmask 1041408
    %v168 = vsel %vm167, %v140, %v165
    %v169 = vld [vmem:[%s1] sm:$0xff]
    %v170 = vld [vmem:[%s1 + $0x8] sm:$0xff]
    %v171 = vld [vmem:[%s1 + $0x10] sm:$0xff]
    %v172 = vld [vmem:[%s1 + $0x18] sm:$0xff]
    %v173 = vld [vmem:[%s2] sm:$0x1]
    %v175 = vperm.slane %v173, 0
    %vm177 = vcmask 261120
    %v179 = vsel %vm177, %v168, 0
    %181 = vmatpush.msra.mxu0 0.0
    %182 = vmatpush.msra.mxu0 0.0
    %183 = vmatpush.msra.mxu0 0.0
    %184 = vmatpush.msra.mxu0 0.0
    %185 = vmatpush.msra.mxu0 0.0
    %186 = vmatpush.msra.mxu0 0.0
    %187 = vmatpush.msra.mxu0 0.0
    %188 = vmatpush.msra.mxu0 0.0
    %189 = vmatpush.msra.mxu0 0.0
    %190 = vmatpush.msra.mxu0 0.0
    %191 = vmatpush.msra.mxu0 0.0
    %192 = vmatpush.msra.mxu0 0.0
    %193 = vmatpush.msra.mxu0 %v172
    %194 = vmatpush.msra.mxu0 %v171
    %195 = vmatpush.msra.mxu0 %v170
    %196 = vmatpush.msra.mxu0 %v169
    %197 = vmatmul.f32.gmra.mxu0 %v179
    %v198 = vpop.f32.mrf.mxu0
    %v199 = vadd.f32 %v175, %v198
    %200 = vdwg.mxu0
    %v201 = vmax.f32 %v199, 0.0
    %v202 = vld [vmem:[%s3] sm:$0x3]
    %v203 = vld [vmem:[%s4] sm:$0x1]
    %v205 = vperm.slane %v203, 0
    %vm207 = vcmask 15360
    %v209 = vsel %vm207, %v201, 0
    %v212 = vsel %vm167, %v202, 0
    %214 = vmatpush.msra.mxu0 0.0
    %215 = vmatpush.msra.mxu0 0.0
    %216 = vmatpush.msra.mxu0 0.0
    %217 = vmatpush.msra.mxu0 0.0
    %218 = vmatpush.msra.mxu0 0.0
    %219 = vmatpush.msra.mxu0 0.0
    %220 = vmatpush.msra.mxu0 0.0
    %221 = vmatpush.msra.mxu0 0.0
    %222 = vmatpush.msra.mxu0 0.0
    %223 = vmatpush.msra.mxu0 0.0
    %224 = vmatpush.msra.mxu0 0.0
    %225 = vmatpush.msra.mxu0 0.0
    %226 = vmatpush.msra.mxu0 0.0
    %227 = vmatpush.msra.mxu0 0.0
    %228 = vmatpush.msra.mxu0 0.0
    %229 = vmatpush.msra.mxu0 %v212
    %230 = vmatmul.f32.gmra.mxu0 %v209
    %v231 = vpop.f32.mrf.mxu0
    %v232 = vadd.f32 %v205, %v231
    %233 = vdwg.mxu0
    %v235 = vrot.slane %v232, 2
    %v237 = vadd.f32 %v232, %v235
    %v238 = vxor.u32 %v237, 2147483648
    %v239 = vmul.f32 %v238, 1.442695
    %v240 = vpow.pop %v239
    %v241 = vadd.f32 %v240, 1.0
    %v242 = vrcp.pop %v241
    %v243 = vmul.f32 %v241, %v242
    %v244 = vsub.f32 1.0, %v243
    %v245 = vmul.f32 %v242, %v244
    %v246 = vadd.f32 %v242, %v245
    %vm247 = vweird.f32 %v241
    %vm248 = vweird.f32 %v242
    %vm249 = vmor %vm247, %vm248
    %v250 = vsel %vm249, %v242, %v246
    %v251 = vand.u32 2147483647, %v241
    %vm252 = vcmp.eq.f32.partialorder %v251, 8.507059e+37
    %v253 = vand.u32 %v241, 2147483648
    %v254 = vor.u32 1.1754944e-38, %v253
    %v255 = vsel %vm252, %v254, %v250
    %v256 = vmul.f32 1.0, %v255
    %v257 = vperm.slane %v256, 0
    %v258 = vlaneseq
    %v259 = vshrl.u32 %v258, 7
    %261 = vset.pattern.permute.xlu0 %v259
    %262 = vperm.xlu0 %261, %v257
    %v263 = vpop.permute.xlu0 %262
    %v264 = vlaneseq
    %v265 = vshrl.u32 %v264, 7
    %v266 = vadd.s32 %v265, 8
    %267 = vset.pattern.permute.xlu0 %v266
    %268 = vperm.xlu0 %267, %v257
    %v269 = vpop.permute.xlu0 %268
    %v270 = vlaneseq
    %v271 = vshrl.u32 %v270, 7
    %v272 = vadd.s32 %v271, 16
    %273 = vset.pattern.permute.xlu0 %v272
    %274 = vperm.xlu0 %273, %v257
    %v275 = vpop.permute.xlu0 %274
    %v276 = vlaneseq
    %v277 = vshrl.u32 %v276, 7
    %v278 = vadd.s32 %v277, 24
    %279 = vset.pattern.permute.xlu0 %v278
    %280 = vperm.xlu0 %279, %v257
    %v281 = vpop.permute.xlu0 %280
    %v282 = vperm.slane %v256, 1
    %v283 = vlaneseq
    %v284 = vshrl.u32 %v283, 7
    %286 = vset.pattern.permute.xlu0 %v284
    %287 = vperm.xlu0 %286, %v282
    %v288 = vpop.permute.xlu0 %287
    %v289 = vlaneseq
    %v290 = vshrl.u32 %v289, 7
    %v291 = vadd.s32 %v290, 8
    %292 = vset.pattern.permute.xlu0 %v291
    %293 = vperm.xlu0 %292, %v282
    %v294 = vpop.permute.xlu0 %293
    %v295 = vlaneseq
    %v296 = vshrl.u32 %v295, 7
    %v297 = vadd.s32 %v296, 16
    %298 = vset.pattern.permute.xlu0 %v297
    %299 = vperm.xlu0 %298, %v282
    %v300 = vpop.permute.xlu0 %299
    %v301 = vlaneseq
    %v302 = vshrl.u32 %v301, 7
    %v303 = vadd.s32 %v302, 24
    %304 = vset.pattern.permute.xlu0 %v303
    %305 = vperm.xlu0 %304, %v282
    %v306 = vpop.permute.xlu0 %305
    %v307 = vmul.f32 %v37, %v263
    %v308 = vmul.f32 %v38, %v263
    %v309 = vmul.f32 %v39, %v269
    %v310 = vmul.f32 %v40, %v269
    %v311 = vmul.f32 %v41, %v275
    %v312 = vmul.f32 %v42, %v275
    %v313 = vmul.f32 %v43, %v281
    %v314 = vmul.f32 %v44, %v281
    %v315 = vmul.f32 %v45, %v288
    %v316 = vmul.f32 %v46, %v288
    %v317 = vmul.f32 %v47, %v294
    %v318 = vmul.f32 %v48, %v294
    %v319 = vmul.f32 %v49, %v300
    %v320 = vmul.f32 %v50, %v300
    %v321 = vmul.f32 %v51, %v306
    %v322 = vmul.f32 %v52, %v306
    %323 = vst [vmem:[#allocation5] sm:$0xff] %v307
    %324 = vst [vmem:[#allocation5 + $0x8] sm:$0xff] %v308
    %325 = vst [vmem:[#allocation5 + $0x10] sm:$0xff] %v309
    %326 = vst [vmem:[#allocation5 + $0x18] sm:$0xff] %v310
    %327 = vst [vmem:[#allocation5 + $0x20] sm:$0xff] %v311
    %328 = vst [vmem:[#allocation5 + $0x28] sm:$0xff] %v312
    %329 = vst [vmem:[#allocation5 + $0x30] sm:$0xff] %v313
    %330 = vst [vmem:[#allocation5 + $0x38] sm:$0xff] %v314
    %331 = vst [vmem:[#allocation5 + $0x40] sm:$0xff] %v315
    %332 = vst [vmem:[#allocation5 + $0x48] sm:$0xff] %v316
    %333 = vst [vmem:[#allocation5 + $0x50] sm:$0xff] %v317
    %334 = vst [vmem:[#allocation5 + $0x58] sm:$0xff] %v318
    %335 = vst [vmem:[#allocation5 + $0x60] sm:$0xff] %v319
    %336 = vst [vmem:[#allocation5 + $0x68] sm:$0xff] %v320
    %337 = vst [vmem:[#allocation5 + $0x70] sm:$0xff] %v321
    %338 = vst [vmem:[#allocation5 + $0x78] sm:$0xff] %v322
    // Predicated region
    $region26: #{tpu_custom_call.1} parent=1 // pred_check
      _
    $region27: #{tpu_custom_call.1} parent=1 // pred_check_branch
      %340 = sbr.rel (0) target = $region29
    $region28: #{tpu_custom_call.1} parent=1 // pred_region
      %342 = vsyncadd [#allocation4], 0
      %s343 = sshll.u32 [#allocation5], 4
      %s344 = int_to_ptr.vmem [resolvable:$true] %s343
      %s345 = sshll.u32 %s5, 4
      %s346 = int_to_ptr.hbm [resolvable:$true] %s345
      %351 = dma.vmem_to_hbm [thread:$0]  %s344, 2048, %s346, [#allocation4], 256, 256, 16
    $region29: #{tpu_custom_call.1} parent=1 // pred_fallthru
      _
    // Predicated region
    $region30: #{tpu_custom_call.1} parent=1 // pred_check
      _
    $region31: #{tpu_custom_call.1} parent=1 // pred_check_branch
      %353 = sbr.rel (0) target = $region33
    $region32: #{tpu_custom_call.1} parent=1 // pred_region
      %355 = dma.done [#allocation4], 2048
    $region33: #{tpu_custom_call.1} parent=1 // pred_fallthru
      _
    %356 = vsyncpa [#allocation3], 1
    %357 = vsyncpa [#allocation4], 1

</llo_original>
